<compile_context>
chip_gen: v6e
topology: v6e:2x2x1
jax: 0.10.0
libtpu: 0.0.40
codegen_flags: <defaults>
</compile_context>

<pallas_src>
import functools

import numpy as np
import jax
import jax.numpy as jnp
from jax.experimental import pallas as pl
from jax.experimental.pallas import tpu as pltpu


# ------------------------- schedule (glue, mirrors torch float64 math) ----------
def sigmoid_beta_schedule(timesteps, start=-3, end=3, tau=1):
    steps = timesteps + 1
    t = np.linspace(0, timesteps, steps, dtype=np.float64) / timesteps
    sig = lambda u: 1.0 / (1.0 + np.exp(-u))
    v_start = sig(start / tau)
    v_end = sig(end / tau)
    alphas_cumprod = (-sig((t * (end - start) + start) / tau) + v_end) / (v_end - v_start)
    alphas_cumprod = alphas_cumprod / alphas_cumprod[0]
    betas = 1.0 - alphas_cumprod[1:] / alphas_cumprod[:-1]
    return np.clip(betas, 0.0, 0.999)


# ------------------------------- Pallas kernel ----------------------------------
def ddpm_loss_kernel(
    # scalar-prefetch refs (SMEM)
    t_ref, sqrt_ac_ref, sqrt_omac_ref,
    # tensor inputs (VMEM blocks)
    img_ref, noise_ref, temb_ref, b1_ref, w1_ref, w2_ref, b2_ref,
    # output: per-batch lane-dense partial-sum row
    psum_ref,
    *, channels,
):
    b = pl.program_id(0)
    t = t_ref[b]
    c1 = sqrt_ac_ref[t]            # sqrt(alphas_cumprod[t])
    c2 = sqrt_omac_ref[t]          # sqrt(1 - alphas_cumprod[t])

    img = img_ref[...]             # (C, N)  channels on sublanes, pixels on lanes
    nz = noise_ref[...]            # (C, N)

    # forward diffusion q(x_t | x_0), reparameterized eq. 4 (scalar coefficients)
    x_t = c1 * img + c2 * nz       # (C, N)

    # layer 1: K = C is tiny -> unrolled broadcast-FMA on the VPU, seeded with
    # the combined bias column (b1 + temb[t]).  No MXU push/drain for ~0 flops
    # and no extra bias tensor beyond the activation itself.
    bias = temb_ref[...] + b1_ref[...]                    # (Hd, 1)
    h = bias + w1_ref[:, 0:1] * x_t[0:1, :]               # (Hd, N)
    for c in range(1, channels):                          # static, unrolled (C=4)
        h = h + w1_ref[:, c:c + 1] * x_t[c:c + 1, :]
    h = jnp.maximum(h, 0.0)

    # layer 2: K = Hd -> MXU with f32 accumulation
    out = jnp.dot(w2_ref[...], h, preferred_element_type=jnp.float32)
    out = out + b2_ref[...]                               # (C, N)

    # objective == 'pred_noise': target = noise.  Sublane reduce, then lane
    # reduce, then an unmasked lane-dense row store of the per-batch SSE.
    diff = out - nz
    sq = diff * diff
    col = jnp.sum(sq, axis=0, keepdims=True)              # (1, N)
    partial = jnp.sum(col, axis=1, keepdims=True)         # (1, 1)
    psum_ref[...] = jnp.broadcast_to(partial, psum_ref.shape)


# ------------------------------- wrapper -----------------------------------------
def ddpm_forward(image, timestep, noise, params, sqrt_ac, sqrt_omac):
    """Returns the scalar DDPM training loss (pred_noise objective)."""
    B, C, H, W = image.shape
    N = H * W                      # 256 here; keep a multiple of 128 for lane density

    w1, b1, w2, b2, temb = (params["w1"], params["b1"], params["w2"],
                            params["b2"], params["temb"])
    Hd = w1.shape[0]
    T = temb.shape[0]

    # Free reshapes only — no transposes / HBM rewrites of the big tensors.
    img3 = image.reshape(B, C, N).astype(jnp.float32)
    nz3 = noise.reshape(B, C, N).astype(jnp.float32)
    # 2-D (T, Hd) table stored row-major; trailing unit axis (free reshape) so
    # the index_map-gathered block is already an (Hd, 1) column.
    temb3 = temb.reshape(T, Hd, 1)

    kernel = functools.partial(ddpm_loss_kernel, channels=C)

    # NOTE: for large H*W add a second ('parallel') grid axis over N-tiles
    # (>=512-wide, multiple of 128) with per-tile partial sums; the structure
    # below already supports it via extra out blocks summed in the wrapper.
    grid_spec = pltpu.PrefetchScalarGridSpec(
        num_scalar_prefetch=3,     # timestep, sqrt_ac, sqrt_omac -> SMEM
        grid=(B,),
        in_specs=[
            pl.BlockSpec((None, C, N), lambda b, *_: (b, 0, 0)),    # img  (C, N)
            pl.BlockSpec((None, C, N), lambda b, *_: (b, 0, 0)),    # noise (C, N)
            # per-batch timestep-embedding column gathered via scalar prefetch:
            pl.BlockSpec((None, Hd, 1), lambda b, t_ref, *_: (t_ref[b], 0, 0)),
            pl.BlockSpec((Hd, 1), lambda b, *_: (0, 0)),            # b1
            pl.BlockSpec((Hd, C), lambda b, *_: (0, 0)),            # w1
            pl.BlockSpec((C, Hd), lambda b, *_: (0, 0)),            # w2
            pl.BlockSpec((C, 1), lambda b, *_: (0, 0)),             # b2
        ],
        out_specs=pl.BlockSpec((None, 1, 128), lambda b, *_: (b, 0, 0)),
    )

    partials = pl.pallas_call(
        kernel,
        grid_spec=grid_spec,
        out_shape=jax.ShapeDtypeStruct((B, 1, 128), jnp.float32),
        compiler_params=pltpu.CompilerParams(
            dimension_semantics=("parallel",),
            vmem_limit_bytes=32 * 1024 * 1024),
    )(
        timestep.astype(jnp.int32), sqrt_ac, sqrt_omac,
        img3, nz3, temb3, b1, w1, w2, b2,
    )
    # mean of per-batch means == global mean (equal per-batch element counts)
    return jnp.sum(partials[:, 0, 0]) / float(B * C * N)


# ------------------------------- pure-JAX reference -------------------------------
def ddpm_forward_ref(image, timestep, noise, params, sqrt_ac, sqrt_omac):
    B, C, H, W = image.shape
    c1 = sqrt_ac[timestep].reshape(B, 1, 1, 1)
    c2 = sqrt_omac[timestep].reshape(B, 1, 1, 1)
    x_t = c1 * image + c2 * noise
    x = x_t.reshape(B, C, H * W)
    temb = params["temb"][timestep][:, :, None]            # (B, Hd, 1)
    h = jnp.einsum("hc,bcn->bhn", params["w1"], x) + params["b1"][None] + temb
    h = jnp.maximum(h, 0.0)
    out = jnp.einsum("ch,bhn->bcn", params["w2"], h) + params["b2"][None]
    sq = (out - noise.reshape(B, C, H * W)) ** 2
    return jnp.mean(jnp.mean(sq.reshape(B, -1), axis=1))


if __name__ == "__main__":
    B, C, H, W = 2, 4, 16, 16
    T = 100          # num_timesteps (small synthetic value; reference default is 1000)
    Hd = 32          # hidden width of the synthetic denoise model

    key = jax.random.PRNGKey(0)
    k_img, k_noise, k_t, k_w1, k_w2, k_temb = jax.random.split(key, 6)

    image = jax.random.normal(k_img, (B, C, H, W), jnp.float32)
    noise = jax.random.normal(k_noise, (B, C, H, W), jnp.float32)
    timestep = jax.random.randint(k_t, (B,), 0, T)          # torch.randint(0, T, (b,))

    # register_buffer equivalents (computed in float64, cast to float32)
    betas = sigmoid_beta_schedule(T)
    alphas = 1.0 - betas
    alphas_cumprod = np.cumprod(alphas)
    sqrt_ac = jnp.asarray(np.sqrt(alphas_cumprod), jnp.float32)
    sqrt_omac = jnp.asarray(np.sqrt(1.0 - alphas_cumprod), jnp.float32)

    # deterministic synthetic denoise-model parameters (temb stored 2-D (T, Hd))
    params = {
        "w1": 0.1 * jax.random.normal(k_w1, (Hd, C), jnp.float32),
        "b1": jnp.zeros((Hd, 1), jnp.float32),
        "w2": 0.1 * jax.random.normal(k_w2, (C, Hd), jnp.float32),
        "b2": jnp.zeros((C, 1), jnp.float32),
        "temb": 0.1 * jax.random.normal(k_temb, (T, Hd), jnp.float32),
    }
    # TODO(synk): the reference module wraps a full UNet; a per-pixel MLP + time
    # embedding stands in for it here (same I/O contract: (b,c,h,w), (b,) -> (b,c,h,w)).

    loss = ddpm_forward(image, timestep, noise, params, sqrt_ac, sqrt_omac)
    loss = jax.block_until_ready(loss)

    loss_ref = ddpm_forward_ref(image, timestep, noise, params, sqrt_ac, sqrt_omac)
    np_loss, np_ref = np.asarray(loss), np.asarray(loss_ref)
    assert np.isfinite(np_loss), "loss is not finite"
    assert np.allclose(np_loss, np_ref, rtol=1e-4, atol=1e-5), (np_loss, np_ref)

    print("KERNEL_OK")
</pallas_src>

<mosaic_0001>
module attributes {stable_mosaic.version = 11 : i64} {
  func.func @ddpm_loss_kernel(%arg0: i32, %arg1: memref<2xi32, #tpu.memory_space<smem>>, %arg2: memref<100xf32, #tpu.memory_space<smem>>, %arg3: memref<100xf32, #tpu.memory_space<smem>>, %arg4: memref<1x4x256xf32, #tpu.memory_space<vmem>>, %arg5: memref<1x4x256xf32, #tpu.memory_space<vmem>>, %arg6: memref<1x32x1xf32, #tpu.memory_space<vmem>>, %arg7: memref<32x1xf32, #tpu.memory_space<vmem>>, %arg8: memref<32x4xf32, #tpu.memory_space<vmem>>, %arg9: memref<4x32xf32, #tpu.memory_space<vmem>>, %arg10: memref<4x1xf32, #tpu.memory_space<vmem>>, %arg11: memref<1x1x128xf32, #tpu.memory_space<vmem>>) attributes {dimension_semantics = [#tpu.dimension_semantics<parallel>], iteration_bounds = array<i64: 2>, scalar_prefetch = 3 : i64, scratch_operands = 0 : i64, tpu.core_type = #tpu.core_type<tc>, window_params = [{transform_indices = @transform_0, window_bounds = array<i64: 1, 4, 256>}, {transform_indices = @transform_1, window_bounds = array<i64: 1, 4, 256>}, {transform_indices = @transform_2, window_bounds = array<i64: 1, 32, 1>}, {pipeline_mode = #tpu.pipeline_mode<synchronous>, transform_indices = @transform_3, window_bounds = array<i64: 32, 1>}, {pipeline_mode = #tpu.pipeline_mode<synchronous>, transform_indices = @transform_4, window_bounds = array<i64: 32, 4>}, {pipeline_mode = #tpu.pipeline_mode<synchronous>, transform_indices = @transform_5, window_bounds = array<i64: 4, 32>}, {pipeline_mode = #tpu.pipeline_mode<synchronous>, transform_indices = @transform_6, window_bounds = array<i64: 4, 1>}, {transform_indices = @transform_7, window_bounds = array<i64: 1, 1, 128>}]} {
    %0 = arith.index_cast %arg0 : i32 to index
    %1 = memref.load %arg1[%0] : memref<2xi32, #tpu.memory_space<smem>>
    %2 = arith.index_cast %1 : i32 to index
    %3 = memref.load %arg2[%2] : memref<100xf32, #tpu.memory_space<smem>>
    %4 = arith.index_cast %1 : i32 to index
    %5 = memref.load %arg3[%4] : memref<100xf32, #tpu.memory_space<smem>>
    %c0 = arith.constant 0 : index
    %c0_0 = arith.constant 0 : index
    %c0_1 = arith.constant 0 : index
    %6 = vector.load %arg4[%c0, %c0_0, %c0_1] : memref<1x4x256xf32, #tpu.memory_space<vmem>>, vector<1x4x256xf32>
    %7 = vector.shape_cast %6 : vector<1x4x256xf32> to vector<4x256xf32>
    %c0_2 = arith.constant 0 : index
    %c0_3 = arith.constant 0 : index
    %c0_4 = arith.constant 0 : index
    %8 = vector.load %arg5[%c0_2, %c0_3, %c0_4] : memref<1x4x256xf32, #tpu.memory_space<vmem>>, vector<1x4x256xf32>
    %9 = vector.shape_cast %8 : vector<1x4x256xf32> to vector<4x256xf32>
    %10 = vector.broadcast %3 : f32 to vector<4x256xf32>
    %11 = arith.mulf %10, %7 : vector<4x256xf32>
    %12 = vector.broadcast %5 : f32 to vector<4x256xf32>
    %13 = arith.mulf %12, %9 : vector<4x256xf32>
    %14 = arith.addf %11, %13 : vector<4x256xf32>
    %c0_5 = arith.constant 0 : index
    %c0_6 = arith.constant 0 : index
    %c0_7 = arith.constant 0 : index
    %15 = vector.load %arg6[%c0_5, %c0_6, %c0_7] : memref<1x32x1xf32, #tpu.memory_space<vmem>>, vector<1x32x1xf32>
    %16 = vector.shape_cast %15 : vector<1x32x1xf32> to vector<32x1xf32>
    %c0_8 = arith.constant 0 : index
    %c0_9 = arith.constant 0 : index
    %17 = vector.load %arg7[%c0_8, %c0_9] : memref<32x1xf32, #tpu.memory_space<vmem>>, vector<32x1xf32>
    %18 = arith.addf %16, %17 : vector<32x1xf32>
    %c0_10 = arith.constant 0 : index
    %c0_11 = arith.constant 0 : index
    %19 = vector.load %arg8[%c0_10, %c0_11] : memref<32x4xf32, #tpu.memory_space<vmem>>, vector<32x1xf32>
    %20 = vector.extract_strided_slice %14 {offsets = [0, 0], sizes = [1, 256], strides = [1, 1]} : vector<4x256xf32> to vector<1x256xf32>
    %21 = vector.broadcast %19 : vector<32x1xf32> to vector<32x256xf32>
    %22 = vector.broadcast %20 : vector<1x256xf32> to vector<32x256xf32>
    %23 = arith.mulf %21, %22 : vector<32x256xf32>
    %24 = vector.broadcast %18 : vector<32x1xf32> to vector<32x256xf32>
    %25 = arith.addf %24, %23 : vector<32x256xf32>
    %c0_12 = arith.constant 0 : index
    %c1 = arith.constant 1 : index
    %26 = vector.load %arg8[%c0_12, %c1] : memref<32x4xf32, #tpu.memory_space<vmem>>, vector<32x1xf32>
    %27 = vector.extract_strided_slice %14 {offsets = [1, 0], sizes = [1, 256], strides = [1, 1]} : vector<4x256xf32> to vector<1x256xf32>
    %28 = vector.broadcast %26 : vector<32x1xf32> to vector<32x256xf32>
    %29 = vector.broadcast %27 : vector<1x256xf32> to vector<32x256xf32>
    %30 = arith.mulf %28, %29 : vector<32x256xf32>
    %31 = arith.addf %25, %30 : vector<32x256xf32>
    %c0_13 = arith.constant 0 : index
    %c2 = arith.constant 2 : index
    %32 = vector.load %arg8[%c0_13, %c2] : memref<32x4xf32, #tpu.memory_space<vmem>>, vector<32x1xf32>
    %33 = vector.extract_strided_slice %14 {offsets = [2, 0], sizes = [1, 256], strides = [1, 1]} : vector<4x256xf32> to vector<1x256xf32>
    %34 = vector.broadcast %32 : vector<32x1xf32> to vector<32x256xf32>
    %35 = vector.broadcast %33 : vector<1x256xf32> to vector<32x256xf32>
    %36 = arith.mulf %34, %35 : vector<32x256xf32>
    %37 = arith.addf %31, %36 : vector<32x256xf32>
    %c0_14 = arith.constant 0 : index
    %c3 = arith.constant 3 : index
    %38 = vector.load %arg8[%c0_14, %c3] : memref<32x4xf32, #tpu.memory_space<vmem>>, vector<32x1xf32>
    %39 = vector.extract_strided_slice %14 {offsets = [3, 0], sizes = [1, 256], strides = [1, 1]} : vector<4x256xf32> to vector<1x256xf32>
    %40 = vector.broadcast %38 : vector<32x1xf32> to vector<32x256xf32>
    %41 = vector.broadcast %39 : vector<1x256xf32> to vector<32x256xf32>
    %42 = arith.mulf %40, %41 : vector<32x256xf32>
    %43 = arith.addf %37, %42 : vector<32x256xf32>
    %cst = arith.constant 0.000000e+00 : f32
    %44 = vector.broadcast %cst : f32 to vector<32x256xf32>
    %45 = arith.maximumf %43, %44 : vector<32x256xf32>
    %c0_15 = arith.constant 0 : index
    %c0_16 = arith.constant 0 : index
    %46 = vector.load %arg9[%c0_15, %c0_16] : memref<4x32xf32, #tpu.memory_space<vmem>>, vector<4x32xf32>
    %cst_17 = arith.constant dense<0.000000e+00> : vector<4x256xf32>
    %47 = tpu.matmul %46, %45, %cst_17 {dimension_numbers = #tpu.dot_dimension_numbers<[1], [0], [0], [1], [0, 0, 1, 1], [], []>} : vector<4x32xf32>, vector<32x256xf32>, vector<4x256xf32> -> vector<4x256xf32>
    %c0_18 = arith.constant 0 : index
    %c0_19 = arith.constant 0 : index
    %48 = vector.load %arg10[%c0_18, %c0_19] : memref<4x1xf32, #tpu.memory_space<vmem>>, vector<4x1xf32>
    %49 = vector.broadcast %48 : vector<4x1xf32> to vector<4x256xf32>
    %50 = arith.addf %47, %49 : vector<4x256xf32>
    %51 = arith.subf %50, %9 : vector<4x256xf32>
    %52 = arith.mulf %51, %51 : vector<4x256xf32>
    %cst_20 = arith.constant dense<0.000000e+00> : vector<256xf32>
    %53 = vector.multi_reduction <add>, %52, %cst_20 [0] : vector<4x256xf32> to vector<256xf32>
    %54 = vector.shape_cast %53 : vector<256xf32> to vector<1x256xf32>
    %cst_21 = arith.constant dense<0.000000e+00> : vector<1xf32>
    %55 = vector.multi_reduction <add>, %54, %cst_21 [1] : vector<1x256xf32> to vector<1xf32>
    %56 = vector.shape_cast %55 : vector<1xf32> to vector<1x1xf32>
    %57 = vector.shape_cast %56 : vector<1x1xf32> to vector<1x1xf32>
    %58 = vector.broadcast %57 : vector<1x1xf32> to vector<1x128xf32>
    %c0_22 = arith.constant 0 : index
    %c0_23 = arith.constant 0 : index
    %c0_24 = arith.constant 0 : index
    %59 = vector.load %arg11[%c0_22, %c0_23, %c0_24] : memref<1x1x128xf32, #tpu.memory_space<vmem>>, vector<1x1x128xf32>
    %60 = vector.shape_cast %59 : vector<1x1x128xf32> to vector<1x128xf32>
    %61 = vector.shape_cast %58 : vector<1x128xf32> to vector<1x1x128xf32>
    tpu.vector_store %arg11[%c0_22, %c0_23, %c0_24], %61 {strides = array<i32>} : memref<1x1x128xf32, #tpu.memory_space<vmem>>, vector<1x1x128xf32>,
    return
  }
  func.func @transform_0(%arg0: i32, %arg1: memref<2xi32, #tpu.memory_space<smem>>, %arg2: memref<100xf32, #tpu.memory_space<smem>>, %arg3: memref<100xf32, #tpu.memory_space<smem>>) -> (i32, i32, i32) {
    %c0_i32 = arith.constant 0 : i32
    %c0_i32_0 = arith.constant 0 : i32
    %c0_i32_1 = arith.constant 0 : i32
    return %arg0, %c0_i32, %c0_i32_0 : i32, i32, i32
  }
  func.func @transform_1(%arg0: i32, %arg1: memref<2xi32, #tpu.memory_space<smem>>, %arg2: memref<100xf32, #tpu.memory_space<smem>>, %arg3: memref<100xf32, #tpu.memory_space<smem>>) -> (i32, i32, i32) {
    %c0_i32 = arith.constant 0 : i32
    %c0_i32_0 = arith.constant 0 : i32
    %c0_i32_1 = arith.constant 0 : i32
    return %arg0, %c0_i32, %c0_i32_0 : i32, i32, i32
  }
  func.func @transform_2(%arg0: i32, %arg1: memref<2xi32, #tpu.memory_space<smem>>, %arg2: memref<100xf32, #tpu.memory_space<smem>>, %arg3: memref<100xf32, #tpu.memory_space<smem>>) -> (i32, i32, i32) {
    %0 = arith.index_cast %arg0 : i32 to index
    %1 = memref.load %arg1[%0] : memref<2xi32, #tpu.memory_space<smem>>
    %c0_i32 = arith.constant 0 : i32
    %c0_i32_0 = arith.constant 0 : i32
    %c0_i32_1 = arith.constant 0 : i32
    return %1, %c0_i32, %c0_i32_0 : i32, i32, i32
  }
  func.func @transform_3(%arg0: i32, %arg1: memref<2xi32, #tpu.memory_space<smem>>, %arg2: memref<100xf32, #tpu.memory_space<smem>>, %arg3: memref<100xf32, #tpu.memory_space<smem>>) -> (i32, i32) {
    %c0_i32 = arith.constant 0 : i32
    %c0_i32_0 = arith.constant 0 : i32
    %c0_i32_1 = arith.constant 0 : i32
    return %c0_i32, %c0_i32_0 : i32, i32
  }
  func.func @transform_4(%arg0: i32, %arg1: memref<2xi32, #tpu.memory_space<smem>>, %arg2: memref<100xf32, #tpu.memory_space<smem>>, %arg3: memref<100xf32, #tpu.memory_space<smem>>) -> (i32, i32) {
    %c0_i32 = arith.constant 0 : i32
    %c0_i32_0 = arith.constant 0 : i32
    %c0_i32_1 = arith.constant 0 : i32
    return %c0_i32, %c0_i32_0 : i32, i32
  }
  func.func @transform_5(%arg0: i32, %arg1: memref<2xi32, #tpu.memory_space<smem>>, %arg2: memref<100xf32, #tpu.memory_space<smem>>, %arg3: memref<100xf32, #tpu.memory_space<smem>>) -> (i32, i32) {
    %c0_i32 = arith.constant 0 : i32
    %c0_i32_0 = arith.constant 0 : i32
    %c0_i32_1 = arith.constant 0 : i32
    return %c0_i32, %c0_i32_0 : i32, i32
  }
  func.func @transform_6(%arg0: i32, %arg1: memref<2xi32, #tpu.memory_space<smem>>, %arg2: memref<100xf32, #tpu.memory_space<smem>>, %arg3: memref<100xf32, #tpu.memory_space<smem>>) -> (i32, i32) {
    %c0_i32 = arith.constant 0 : i32
    %c0_i32_0 = arith.constant 0 : i32
    %c0_i32_1 = arith.constant 0 : i32
    return %c0_i32, %c0_i32_0 : i32, i32
  }
  func.func @transform_7(%arg0: i32, %arg1: memref<2xi32, #tpu.memory_space<smem>>, %arg2: memref<100xf32, #tpu.memory_space<smem>>, %arg3: memref<100xf32, #tpu.memory_space<smem>>) -> (i32, i32, i32) {
    %c0_i32 = arith.constant 0 : i32
    %c0_i32_0 = arith.constant 0 : i32
    %c0_i32_1 = arith.constant 0 : i32
    return %arg0, %c0_i32, %c0_i32_0 : i32, i32, i32
  }
}

</mosaic_0001>

<llo_original>
// kernel: tpu_custom_call.1
$region0: #{tpu_custom_call.1}
  #allocation0 [shape = 'u32[]', space=smem, size = 0x4, offset = 0x4, fixed_abs, tag = 'smem constant byte address 0x4 - core index']
  #allocation1 [shape = 'u32[144,128]{1,0:T(1,128)}', space=vmem, size = 0x12000, scoped, tag = 'internal scratch']
  #allocation2 [shape = 's32[1]{0}', space=sflag, size = 0x4, scoped, tag = 'scoped memory for tpu_custom_call.1']
  #allocation3 [shape = 'u8[512]{0}', space=smem, size = 0x200, scoped, tag = 'prefetched SMEM operand 0']
  #allocation4 [shape = 'u8[512]{0}', space=smem, size = 0x200, scoped, tag = 'prefetched SMEM operand 1']
  #allocation5 [shape = 'u8[512]{0}', space=smem, size = 0x200, scoped, tag = 'prefetched SMEM operand 2']
  %s0 = inlined_call_operand.vmem [shape: s32[2], index: 0, kind: input, shape index: {}]
  %s1 = inlined_call_operand.vmem [shape: f32[100], index: 1, kind: input, shape index: {}]
  %s2 = inlined_call_operand.vmem [shape: f32[100], index: 2, kind: input, shape index: {}]
  %s3 = inlined_call_operand.vmem [shape: f32[2,4,256], index: 3, kind: input, shape index: {}]
  %s4 = inlined_call_operand.vmem [shape: f32[2,4,256], index: 4, kind: input, shape index: {}]
  %s5 = inlined_call_operand.vmem [shape: f32[100,32,1], index: 5, kind: input, shape index: {}]
  %s6 = inlined_call_operand.vmem [shape: f32[32,1], index: 6, kind: input, shape index: {}]
  %s7 = inlined_call_operand.vmem [shape: f32[32,4], index: 7, kind: input, shape index: {}]
  %s8 = inlined_call_operand.vmem [shape: f32[4,32], index: 8, kind: input, shape index: {}]
  %s9 = inlined_call_operand.vmem [shape: f32[4,1], index: 9, kind: input, shape index: {}]
  %s10 = inlined_call_operand.hbm [shape: f32[2,1,128], index: 10, kind: output, shape index: {}]
  %s11 = sld [smem:[#allocation0]]
  $region61: #{tpu_custom_call.1} parent=0
    _
  %s13 = ssub.s32 1, %s11
  %s14 = scalar_select 0, %s13, %s11
  %s15 = sshll.u32 %s0, 4
  %s16 = int_to_ptr.vmem [resolvable:$true] %s15
  %18 = dma.vmem_to_smem %s16, 16, [#allocation3], [#allocation2]
  %s19 = sshll.u32 %s1, 4
  %s20 = int_to_ptr.vmem [resolvable:$true] %s19
  %22 = dma.vmem_to_smem %s20, 16, [#allocation4], [#allocation2]
  %s23 = sshll.u32 %s2, 4
  %s24 = int_to_ptr.vmem [resolvable:$true] %s23
  %26 = dma.vmem_to_smem %s24, 16, [#allocation5], [#allocation2]
  %27 = dma.done [#allocation2], 48
  %28 = sfence
  $region1: #{tpu_custom_call.1} parent=0
    #allocation6 [shape = 'u8[1024]{0}', space=vmem, size = 0x400, scoped, tag = 'output window, operand 0']
    #allocation7 [shape = 's32[2]{0}', space=sflag, size = 0x8, scoped, tag = 'scoped memory for tpu_custom_call.1']
    %29 = vsyncpa [#allocation7], 0
    %s30 = scalar_lea.sflag [#allocation7], 1
    %31 = vsyncpa %s30, 0
    loop: start=0, step=1, limit=4
    $region2: #{tpu_custom_call.1} parent=1 // loop_pre_header
      _
    $region3: #{tpu_custom_call.1} parent=1 // loop_header
      %s33 = sphi 0, %s37
      %p34 = scmp.ge.s32.totalorder %s33, 4
      %s43 = sphi 0, %s45
      %s46 = sphi 0, %s43
      %s47 = sphi 0, %s46
      %s63 = sphi 0, %s47
      %s69 = sphi 0, %s71
      %s72 = sphi 0, %s69
      %s73 = sphi 0, %s72
      %s89 = sphi 0, %s73
      %s97 = sphi 0, %s99
      %s100 = sphi 0, %s97
      %s101 = sphi 0, %s100
      %s117 = sphi 0, %s101
      %s121 = sphi 0, %s121
      %s123 = sphi 0, %s121
      %s124 = sphi 0, %s123
      %s138 = sphi 0, %s124
      %s142 = sphi 0, %s142
      %s144 = sphi 0, %s142
      %s145 = sphi 0, %s144
      %s159 = sphi 0, %s145
      %s163 = sphi 0, %s163
      %s165 = sphi 0, %s163
      %s166 = sphi 0, %s165
      %s180 = sphi 0, %s166
      %s184 = sphi 0, %s184
      %s186 = sphi 0, %s184
      %s187 = sphi 0, %s186
      %s201 = sphi 0, %s187
      %s207 = sphi 0, %s209
      %s210 = sphi 0, %s207
      %s211 = sphi 0, %s210
      %s227 = sphi 0, %s211
    $region4: #{tpu_custom_call.1} parent=1 // loop_header_branch
      %36 = sbr.rel (%p34) target = $region8
    $region5: #{tpu_custom_call.1} parent=1 // loop_body
      %s38 = ssub.s32 %s33, 1
      %s39 = ssub.s32 %s33, 2
      %s40 = sadd.s32 %s33, 1
      %s41 = ssub.s32 %s33, %s40
      %p42 = scmp.eq.s32.totalorder %s41, 0
      %s44 = sadd.s32 %s43, 1
      %s45 = scalar_select %p42, %s43, %s44
      %p48 = pneg %p42
      %p49 = scmp.eq.s32.totalorder %s33, 1
      %p50 = por %p48, %p49
      %p51 = scmp.ne.s32.totalorder %s43, %s46
      %p52 = scmp.eq.s32.totalorder %s33, 0
      %p53 = por %p51, %p52
      %p54 = scmp.ne.s32.totalorder %s43, %s46
      %p55 = scmp.eq.s32.totalorder %s38, 1
      %p56 = por %p54, %p55
      %p57 = scmp.ne.s32.totalorder %s46, %s47
      %p58 = scmp.eq.s32.totalorder %s38, 0
      %p59 = por %p57, %p58
      %p60 = scmp.ne.s32.totalorder %s46, %s47
      %p61 = scmp.eq.s32.totalorder %s39, 1
      %p62 = por %p60, %p61
      %p64 = scmp.ne.s32.totalorder %s47, %s63
      %p65 = scmp.eq.s32.totalorder %s39, 0
      %p66 = por %p64, %p65
      %s67 = ssub.s32 %s33, %s40
      %p68 = scmp.eq.s32.totalorder %s67, 0
      %s70 = sadd.s32 %s69, 1
      %s71 = scalar_select %p68, %s69, %s70
      %p74 = pneg %p68
      %p75 = scmp.eq.s32.totalorder %s33, 1
      %p76 = por %p74, %p75
      %p77 = scmp.ne.s32.totalorder %s69, %s72
      %p78 = scmp.eq.s32.totalorder %s33, 0
      %p79 = por %p77, %p78
      %p80 = scmp.ne.s32.totalorder %s69, %s72
      %p81 = scmp.eq.s32.totalorder %s38, 1
      %p82 = por %p80, %p81
      %p83 = scmp.ne.s32.totalorder %s72, %s73
      %p84 = scmp.eq.s32.totalorder %s38, 0
      %p85 = por %p83, %p84
      %p86 = scmp.ne.s32.totalorder %s72, %s73
      %p87 = scmp.eq.s32.totalorder %s39, 1
      %p88 = por %p86, %p87
      %p90 = scmp.ne.s32.totalorder %s73, %s89
      %p91 = scmp.eq.s32.totalorder %s39, 0
      %p92 = por %p90, %p91
      %s93 = sld [smem:[#allocation3 + %s33]]
      %s94 = sld [smem:[#allocation3 + %s40]]
      %s95 = ssub.s32 %s93, %s94
      %p96 = scmp.eq.s32.totalorder %s95, 0
      %s98 = sadd.s32 %s97, 1
      %s99 = scalar_select %p96, %s97, %s98
      %p102 = pneg %p96
      %p103 = scmp.eq.s32.totalorder %s33, 1
      %p104 = por %p102, %p103
      %p105 = scmp.ne.s32.totalorder %s97, %s100
      %p106 = scmp.eq.s32.totalorder %s33, 0
      %p107 = por %p105, %p106
      %p108 = scmp.ne.s32.totalorder %s97, %s100
      %p109 = scmp.eq.s32.totalorder %s38, 1
      %p110 = por %p108, %p109
      %p111 = scmp.ne.s32.totalorder %s100, %s101
      %p112 = scmp.eq.s32.totalorder %s38, 0
      %p113 = por %p111, %p112
      %p114 = scmp.ne.s32.totalorder %s100, %s101
      %p115 = scmp.eq.s32.totalorder %s39, 1
      %p116 = por %p114, %p115
      %p118 = scmp.ne.s32.totalorder %s101, %s117
      %p119 = scmp.eq.s32.totalorder %s39, 0
      %p120 = por %p118, %p119
      %s122 = sadd.s32 %s121, 1
      %p125 = scmp.eq.s32.totalorder %s33, 1
      %p126 = scmp.ne.s32.totalorder %s121, %s123
      %p127 = scmp.eq.s32.totalorder %s33, 0
      %p128 = por %p126, %p127
      %p129 = scmp.ne.s32.totalorder %s121, %s123
      %p130 = scmp.eq.s32.totalorder %s38, 1
      %p131 = por %p129, %p130
      %p132 = scmp.ne.s32.totalorder %s123, %s124
      %p133 = scmp.eq.s32.totalorder %s38, 0
      %p134 = por %p132, %p133
      %p135 = scmp.ne.s32.totalorder %s123, %s124
      %p136 = scmp.eq.s32.totalorder %s39, 1
      %p137 = por %p135, %p136
      %p139 = scmp.ne.s32.totalorder %s124, %s138
      %p140 = scmp.eq.s32.totalorder %s39, 0
      %p141 = por %p139, %p140
      %s143 = sadd.s32 %s142, 1
      %p146 = scmp.eq.s32.totalorder %s33, 1
      %p147 = scmp.ne.s32.totalorder %s142, %s144
      %p148 = scmp.eq.s32.totalorder %s33, 0
      %p149 = por %p147, %p148
      %p150 = scmp.ne.s32.totalorder %s142, %s144
      %p151 = scmp.eq.s32.totalorder %s38, 1
      %p152 = por %p150, %p151
      %p153 = scmp.ne.s32.totalorder %s144, %s145
      %p154 = scmp.eq.s32.totalorder %s38, 0
      %p155 = por %p153, %p154
      %p156 = scmp.ne.s32.totalorder %s144, %s145
      %p157 = scmp.eq.s32.totalorder %s39, 1
      %p158 = por %p156, %p157
      %p160 = scmp.ne.s32.totalorder %s145, %s159
      %p161 = scmp.eq.s32.totalorder %s39, 0
      %p162 = por %p160, %p161
      %s164 = sadd.s32 %s163, 1
      %p167 = scmp.eq.s32.totalorder %s33, 1
      %p168 = scmp.ne.s32.totalorder %s163, %s165
      %p169 = scmp.eq.s32.totalorder %s33, 0
      %p170 = por %p168, %p169
      %p171 = scmp.ne.s32.totalorder %s163, %s165
      %p172 = scmp.eq.s32.totalorder %s38, 1
      %p173 = por %p171, %p172
      %p174 = scmp.ne.s32.totalorder %s165, %s166
      %p175 = scmp.eq.s32.totalorder %s38, 0
      %p176 = por %p174, %p175
      %p177 = scmp.ne.s32.totalorder %s165, %s166
      %p178 = scmp.eq.s32.totalorder %s39, 1
      %p179 = por %p177, %p178
      %p181 = scmp.ne.s32.totalorder %s166, %s180
      %p182 = scmp.eq.s32.totalorder %s39, 0
      %p183 = por %p181, %p182
      %s185 = sadd.s32 %s184, 1
      %p188 = scmp.eq.s32.totalorder %s33, 1
      %p189 = scmp.ne.s32.totalorder %s184, %s186
      %p190 = scmp.eq.s32.totalorder %s33, 0
      %p191 = por %p189, %p190
      %p192 = scmp.ne.s32.totalorder %s184, %s186
      %p193 = scmp.eq.s32.totalorder %s38, 1
      %p194 = por %p192, %p193
      %p195 = scmp.ne.s32.totalorder %s186, %s187
      %p196 = scmp.eq.s32.totalorder %s38, 0
      %p197 = por %p195, %p196
      %p198 = scmp.ne.s32.totalorder %s186, %s187
      %p199 = scmp.eq.s32.totalorder %s39, 1
      %p200 = por %p198, %p199
      %p202 = scmp.ne.s32.totalorder %s187, %s201
      %p203 = scmp.eq.s32.totalorder %s39, 0
      %p204 = por %p202, %p203
      %s205 = ssub.s32 %s33, %s40
      %p206 = scmp.eq.s32.totalorder %s205, 0
      %s208 = sadd.s32 %s207, 1
      %s209 = scalar_select %p206, %s207, %s208
      %p212 = pneg %p206
      %p213 = scmp.eq.s32.totalorder %s33, 1
      %p214 = por %p212, %p213
      %p215 = scmp.ne.s32.totalorder %s207, %s210
      %p216 = scmp.eq.s32.totalorder %s33, 0
      %p217 = por %p215, %p216
      %p218 = scmp.ne.s32.totalorder %s207, %s210
      %p219 = scmp.eq.s32.totalorder %s38, 1
      %p220 = por %p218, %p219
      %p221 = scmp.ne.s32.totalorder %s210, %s211
      %p222 = scmp.eq.s32.totalorder %s38, 0
      %p223 = por %p221, %p222
      %p224 = scmp.ne.s32.totalorder %s210, %s211
      %p225 = scmp.eq.s32.totalorder %s39, 1
      %p226 = por %p224, %p225
      %p228 = scmp.ne.s32.totalorder %s211, %s227
      %p229 = scmp.eq.s32.totalorder %s39, 0
      %p230 = por %p228, %p229
      %p231 = scmp.le.s32.totalorder 1, %s33
      %p232 = scmp.lt.s32.totalorder %s33, 3
      %p233 = pnand %p231, %p232
      %p234 = pneg %p233
      // Predicated region
      $region9: #{tpu_custom_call.1} parent=5 // pred_check
        _
      $region10: #{tpu_custom_call.1} parent=5 // pred_check_branch
        %236 = sbr.rel (%p233) target = $region12
      $region11: #{tpu_custom_call.1} parent=5 // pred_region
        %s237 = ssub.s32 %s33, 1
        // Predicated region
        $region13: #{tpu_custom_call.1} parent=11 // pred_check
          %p238 = pneg %p134
        $region14: #{tpu_custom_call.1} parent=11 // pred_check_branch
          %240 = sbr.rel (%p238) target = $region16
        $region15: #{tpu_custom_call.1} parent=11 // pred_region
          _
        $region16: #{tpu_custom_call.1} parent=11 // pred_fallthru
          _
        // Predicated region
        $region17: #{tpu_custom_call.1} parent=11 // pred_check
          %p241 = pneg %p155
        $region18: #{tpu_custom_call.1} parent=11 // pred_check_branch
          %243 = sbr.rel (%p241) target = $region20
        $region19: #{tpu_custom_call.1} parent=11 // pred_region
          _
        $region20: #{tpu_custom_call.1} parent=11 // pred_fallthru
          _
        // Predicated region
        $region21: #{tpu_custom_call.1} parent=11 // pred_check
          %p244 = pneg %p176
        $region22: #{tpu_custom_call.1} parent=11 // pred_check_branch
          %246 = sbr.rel (%p244) target = $region24
        $region23: #{tpu_custom_call.1} parent=11 // pred_region
          _
        $region24: #{tpu_custom_call.1} parent=11 // pred_fallthru
          _
        // Predicated region
        $region25: #{tpu_custom_call.1} parent=11 // pred_check
          %p247 = pneg %p197
        $region26: #{tpu_custom_call.1} parent=11 // pred_check_branch
          %249 = sbr.rel (%p247) target = $region28
        $region27: #{tpu_custom_call.1} parent=11 // pred_region
          _
        $region28: #{tpu_custom_call.1} parent=11 // pred_fallthru
          _
      $region12: #{tpu_custom_call.1} parent=5 // pred_fallthru
        _
      %p250 = scmp.lt.s32.totalorder %s33, 2
      // Predicated region
      $region29: #{tpu_custom_call.1} parent=5 // pred_check
        %p251 = pneg %p250
      $region30: #{tpu_custom_call.1} parent=5 // pred_check_branch
        %253 = sbr.rel (%p251) target = $region32
      $region31: #{tpu_custom_call.1} parent=5 // pred_region
        // Predicated region
        $region33: #{tpu_custom_call.1} parent=31 // pred_check
          %p254 = pneg %p53
        $region34: #{tpu_custom_call.1} parent=31 // pred_check_branch
          %256 = sbr.rel (%p254) target = $region36
        $region35: #{tpu_custom_call.1} parent=31 // pred_region
          %p257 = scmp.lt.s32.totalorder %s33, 1
          %s258 = scalar_select %p257, %s33, 1
          %s259 = smul.addr %s258, 2
          %s260 = smul.addr %s259, 4
          %s261 = scalar_lea.vmem %s3, %s260
        $region36: #{tpu_custom_call.1} parent=31 // pred_fallthru
          _
        // Predicated region
        $region37: #{tpu_custom_call.1} parent=31 // pred_check
          %p262 = pneg %p79
        $region38: #{tpu_custom_call.1} parent=31 // pred_check_branch
          %264 = sbr.rel (%p262) target = $region40
        $region39: #{tpu_custom_call.1} parent=31 // pred_region
          %p265 = scmp.lt.s32.totalorder %s33, 1
          %s266 = scalar_select %p265, %s33, 1
          %s267 = smul.addr %s266, 2
          %s268 = smul.addr %s267, 4
          %s269 = scalar_lea.vmem %s4, %s268
        $region40: #{tpu_custom_call.1} parent=31 // pred_fallthru
          _
        // Predicated region
        $region41: #{tpu_custom_call.1} parent=31 // pred_check
          %p270 = pneg %p107
        $region42: #{tpu_custom_call.1} parent=31 // pred_check_branch
          %272 = sbr.rel (%p270) target = $region44
        $region43: #{tpu_custom_call.1} parent=31 // pred_region
          %s273 = sld [smem:[#allocation3 + %s33]]
          %p274 = scmp.lt.s32.totalorder %s273, 99
          %s275 = scalar_select %p274, %s273, 99
          %s276 = smul.addr %s275, 4
          %s277 = smul.addr %s276, 8
          %s278 = scalar_lea.vmem %s5, %s277
          %s279 = sld [smem:[#allocation3 + %s33]]
        $region44: #{tpu_custom_call.1} parent=31 // pred_fallthru
          _
      $region32: #{tpu_custom_call.1} parent=5 // pred_fallthru
        _
      %p280 = scmp.le.s32.totalorder 1, %s33
      %p281 = scmp.lt.s32.totalorder %s33, 3
      %p282 = pnand %p280, %p281
      %p283 = pneg %p282
      // Predicated region
      $region45: #{tpu_custom_call.1} parent=5 // pred_check
        _
      $region46: #{tpu_custom_call.1} parent=5 // pred_check_branch
        %285 = sbr.rel (%p282) target = $region48
      $region47: #{tpu_custom_call.1} parent=5 // pred_region
        %s286 = ssub.s32 %s33, 1
        %p287 = scmp.lt.s32.totalorder %s38, 1
        %s288 = scalar_select %p287, %s38, 1
        %s289 = smul.addr %s288, 2
        %s290 = smul.addr %s289, 4
        %s291 = scalar_lea.vmem %s3, %s290
        %p292 = pneg %p59
        %p293 = pneg %p56
        %p294 = scmp.lt.s32.totalorder %s38, 1
        %s295 = scalar_select %p294, %s38, 1
        %s296 = smul.addr %s295, 2
        %s297 = smul.addr %s296, 4
        %s298 = scalar_lea.vmem %s4, %s297
        %p299 = pneg %p85
        %p300 = pneg %p82
        %s301 = sld [smem:[#allocation3 + %s38]]
        %p302 = scmp.lt.s32.totalorder %s301, 99
        %s303 = scalar_select %p302, %s301, 99
        %s304 = smul.addr %s303, 4
        %s305 = smul.addr %s304, 8
        %s306 = scalar_lea.vmem %s5, %s305
        %p307 = pneg %p113
        %p308 = pneg %p110
        %p309 = pneg %p134
        %p310 = pneg %p131
        %p311 = pneg %p155
        %p312 = pneg %p152
        %p313 = pneg %p176
        %p314 = pneg %p173
        %p315 = pneg %p197
        %p316 = pneg %p194
        %p317 = pneg %p223
        %p318 = pneg %p220
        %s319 = sand.u32 %s210, 1
        %s320 = scalar_lea.sflag [#allocation7], %s319
        %s321 = sand.u32 %s210, 1
        %s322 = scalar_lea.vmem [#allocation6], %s321
        %p323 = scmp.lt.s32.totalorder %s38, 1
        %s324 = scalar_select %p323, %s38, 1
        %s325 = smul.addr %s324, 2
        %s326 = smul.addr %s325, 4
        %s327 = scalar_lea.vmem %s3, %s326
        %p328 = scmp.lt.s32.totalorder %s38, 1
        %s329 = scalar_select %p328, %s38, 1
        %s330 = smul.addr %s329, 2
        %s331 = smul.addr %s330, 4
        %s332 = scalar_lea.vmem %s4, %s331
        %s333 = sld [smem:[#allocation3 + %s38]]
        %p334 = scmp.lt.s32.totalorder %s333, 99
        %s335 = scalar_select %p334, %s333, 99
        %s336 = smul.addr %s335, 4
        %s337 = smul.addr %s336, 8
        %s338 = scalar_lea.vmem %s5, %s337
        %s339 = sld [smem:[#allocation3 + %s38]]
        %s340 = sld [smem:[#allocation3 + %s38]]
        %s341 = sld [smem:[#allocation4 + %s340]]
        %s342 = sld [smem:[#allocation5 + %s340]]
        %v343 = vld [vmem:[%s327] sm:$0xff]
        %v344 = vld [vmem:[%s332] sm:$0xff]
        %v345 = vstv %s341
        %v346 = vmul.f32 %v345, %v343
        %v347 = vstv %s342
        %v348 = vmul.f32 %v347, %v344
        %v349 = vadd.f32 %v346, %v348
        %v350 = vld [vmem:[%s338] sm:$0xff]
        %v351 = vld [vmem:[%s338 + $0x8] sm:$0xff]
        %v352 = vld [vmem:[%s338 + $0x10] sm:$0xff]
        %v353 = vld [vmem:[%s338 + $0x18] sm:$0xff]
        %v354 = vld [vmem:[%s6] sm:$0xff]
        %v355 = vld [vmem:[%s6 + $0x8] sm:$0xff]
        %v356 = vld [vmem:[%s6 + $0x10] sm:$0xff]
        %v357 = vld [vmem:[%s6 + $0x18] sm:$0xff]
        %v358 = vadd.f32 %v350, %v354
        %v359 = vadd.f32 %v351, %v355
        %v360 = vadd.f32 %v352, %v356
        %v361 = vadd.f32 %v353, %v357
        %v362 = vld [vmem:[%s7] sm:$0xff]
        %v363 = vld [vmem:[%s7 + $0x8] sm:$0xff]
        %v364 = vld [vmem:[%s7 + $0x10] sm:$0xff]
        %v365 = vld [vmem:[%s7 + $0x18] sm:$0xff]
        %367 = vset.pattern.permute.xlu0 0
        %368 = vperm.xlu0 %367, %v362
        %v369 = vpop.permute.xlu0 %368
        %372 = vset.pattern.permute.xlu0 0
        %373 = vperm.xlu0 %372, %v363
        %v374 = vpop.permute.xlu0 %373
        %377 = vset.pattern.permute.xlu0 0
        %378 = vperm.xlu0 %377, %v364
        %v379 = vpop.permute.xlu0 %378
        %382 = vset.pattern.permute.xlu0 0
        %383 = vperm.xlu0 %382, %v365
        %v384 = vpop.permute.xlu0 %383
        %v387 = vlaneseq
        %v388 = vshrl.u32 %v387, 7
        %v389 = vsub.s32 0, %v388
        %v390 = vrot.slane %v349, %v389
        %v391 = vlaneseq
        %v392 = vshrl.u32 %v391, 7
        %v393 = vsub.s32 4, %v392
        %v394 = vrot.slane %v349, %v393
        %v397 = vlaneseq
        %v398 = vshrl.u32 %v397, 7
        %v399 = vsub.s32 0, %v398
        %v400 = vrot.slane %v390, %v399
        %v401 = vlaneseq
        %v402 = vshrl.u32 %v401, 7
        %v403 = vsub.s32 0, %v402
        %v404 = vrot.slane %v394, %v403
        %v405 = vmul.f32 %v369, %v400
        %v406 = vmul.f32 %v369, %v404
        %v407 = vmul.f32 %v374, %v400
        %v408 = vmul.f32 %v374, %v404
        %v409 = vmul.f32 %v379, %v400
        %v410 = vmul.f32 %v379, %v404
        %v411 = vmul.f32 %v384, %v400
        %v412 = vmul.f32 %v384, %v404
        %414 = vset.pattern.permute.xlu0 0
        %415 = vperm.xlu0 %414, %v358
        %v416 = vpop.permute.xlu0 %415
        %419 = vset.pattern.permute.xlu0 0
        %420 = vperm.xlu0 %419, %v359
        %v421 = vpop.permute.xlu0 %420
        %424 = vset.pattern.permute.xlu0 0
        %425 = vperm.xlu0 %424, %v360
        %v426 = vpop.permute.xlu0 %425
        %429 = vset.pattern.permute.xlu0 0
        %430 = vperm.xlu0 %429, %v361
        %v431 = vpop.permute.xlu0 %430
        %v433 = vadd.f32 %v416, %v405
        %v434 = vadd.f32 %v416, %v406
        %v435 = vadd.f32 %v421, %v407
        %v436 = vadd.f32 %v421, %v408
        %v437 = vadd.f32 %v426, %v409
        %v438 = vadd.f32 %v426, %v410
        %v439 = vadd.f32 %v431, %v411
        %v440 = vadd.f32 %v431, %v412
        %441 = vset.pattern.permute.xlu0 1
        %442 = vperm.xlu0 %441, %v362
        %v443 = vpop.permute.xlu0 %442
        %445 = vset.pattern.permute.xlu0 1
        %446 = vperm.xlu0 %445, %v363
        %v447 = vpop.permute.xlu0 %446
        %449 = vset.pattern.permute.xlu0 1
        %450 = vperm.xlu0 %449, %v364
        %v451 = vpop.permute.xlu0 %450
        %453 = vset.pattern.permute.xlu0 1
        %454 = vperm.xlu0 %453, %v365
        %v455 = vpop.permute.xlu0 %454
        %v457 = vlaneseq
        %v458 = vshrl.u32 %v457, 7
        %v459 = vsub.s32 1, %v458
        %v460 = vrot.slane %v349, %v459
        %v461 = vlaneseq
        %v462 = vshrl.u32 %v461, 7
        %v463 = vsub.s32 5, %v462
        %v464 = vrot.slane %v349, %v463
        %v467 = vlaneseq
        %v468 = vshrl.u32 %v467, 7
        %v469 = vsub.s32 1, %v468
        %v470 = vrot.slane %v460, %v469
        %v471 = vlaneseq
        %v472 = vshrl.u32 %v471, 7
        %v473 = vsub.s32 1, %v472
        %v474 = vrot.slane %v464, %v473
        %v475 = vmul.f32 %v443, %v470
        %v476 = vmul.f32 %v443, %v474
        %v477 = vmul.f32 %v447, %v470
        %v478 = vmul.f32 %v447, %v474
        %v479 = vmul.f32 %v451, %v470
        %v480 = vmul.f32 %v451, %v474
        %v481 = vmul.f32 %v455, %v470
        %v482 = vmul.f32 %v455, %v474
        %v483 = vadd.f32 %v433, %v475
        %v484 = vadd.f32 %v434, %v476
        %v485 = vadd.f32 %v435, %v477
        %v486 = vadd.f32 %v436, %v478
        %v487 = vadd.f32 %v437, %v479
        %v488 = vadd.f32 %v438, %v480
        %v489 = vadd.f32 %v439, %v481
        %v490 = vadd.f32 %v440, %v482
        %491 = vset.pattern.permute.xlu0 2
        %492 = vperm.xlu0 %491, %v362
        %v493 = vpop.permute.xlu0 %492
        %495 = vset.pattern.permute.xlu0 2
        %496 = vperm.xlu0 %495, %v363
        %v497 = vpop.permute.xlu0 %496
        %499 = vset.pattern.permute.xlu0 2
        %500 = vperm.xlu0 %499, %v364
        %v501 = vpop.permute.xlu0 %500
        %503 = vset.pattern.permute.xlu0 2
        %504 = vperm.xlu0 %503, %v365
        %v505 = vpop.permute.xlu0 %504
        %v507 = vlaneseq
        %v508 = vshrl.u32 %v507, 7
        %v509 = vsub.s32 2, %v508
        %v510 = vrot.slane %v349, %v509
        %v511 = vlaneseq
        %v512 = vshrl.u32 %v511, 7
        %v513 = vsub.s32 6, %v512
        %v514 = vrot.slane %v349, %v513
        %v517 = vlaneseq
        %v518 = vshrl.u32 %v517, 7
        %v519 = vsub.s32 2, %v518
        %v520 = vrot.slane %v510, %v519
        %v521 = vlaneseq
        %v522 = vshrl.u32 %v521, 7
        %v523 = vsub.s32 2, %v522
        %v524 = vrot.slane %v514, %v523
        %v525 = vmul.f32 %v493, %v520
        %v526 = vmul.f32 %v493, %v524
        %v527 = vmul.f32 %v497, %v520
        %v528 = vmul.f32 %v497, %v524
        %v529 = vmul.f32 %v501, %v520
        %v530 = vmul.f32 %v501, %v524
        %v531 = vmul.f32 %v505, %v520
        %v532 = vmul.f32 %v505, %v524
        %v533 = vadd.f32 %v483, %v525
        %v534 = vadd.f32 %v484, %v526
        %v535 = vadd.f32 %v485, %v527
        %v536 = vadd.f32 %v486, %v528
        %v537 = vadd.f32 %v487, %v529
        %v538 = vadd.f32 %v488, %v530
        %v539 = vadd.f32 %v489, %v531
        %v540 = vadd.f32 %v490, %v532
        %541 = vset.pattern.permute.xlu0 3
        %542 = vperm.xlu0 %541, %v362
        %v543 = vpop.permute.xlu0 %542
        %545 = vset.pattern.permute.xlu0 3
        %546 = vperm.xlu0 %545, %v363
        %v547 = vpop.permute.xlu0 %546
        %549 = vset.pattern.permute.xlu0 3
        %550 = vperm.xlu0 %549, %v364
        %v551 = vpop.permute.xlu0 %550
        %553 = vset.pattern.permute.xlu0 3
        %554 = vperm.xlu0 %553, %v365
        %v555 = vpop.permute.xlu0 %554
        %v557 = vlaneseq
        %v558 = vshrl.u32 %v557, 7
        %v559 = vsub.s32 3, %v558
        %v560 = vrot.slane %v349, %v559
        %v561 = vlaneseq
        %v562 = vshrl.u32 %v561, 7
        %v563 = vsub.s32 7, %v562
        %v564 = vrot.slane %v349, %v563
        %v567 = vlaneseq
        %v568 = vshrl.u32 %v567, 7
        %v569 = vsub.s32 3, %v568
        %v570 = vrot.slane %v560, %v569
        %v571 = vlaneseq
        %v572 = vshrl.u32 %v571, 7
        %v573 = vsub.s32 3, %v572
        %v574 = vrot.slane %v564, %v573
        %v575 = vmul.f32 %v543, %v570
        %v576 = vmul.f32 %v543, %v574
        %v577 = vmul.f32 %v547, %v570
        %v578 = vmul.f32 %v547, %v574
        %v579 = vmul.f32 %v551, %v570
        %v580 = vmul.f32 %v551, %v574
        %v581 = vmul.f32 %v555, %v570
        %v582 = vmul.f32 %v555, %v574
        %v583 = vadd.f32 %v533, %v575
        %v584 = vadd.f32 %v534, %v576
        %v585 = vadd.f32 %v535, %v577
        %v586 = vadd.f32 %v536, %v578
        %v587 = vadd.f32 %v537, %v579
        %v588 = vadd.f32 %v538, %v580
        %v589 = vadd.f32 %v539, %v581
        %v590 = vadd.f32 %v540, %v582
        %v591 = vmax.f32 %v583, 0.0
        %v592 = vmax.f32 %v584, 0.0
        %v593 = vmax.f32 %v585, 0.0
        %v594 = vmax.f32 %v586, 0.0
        %v595 = vmax.f32 %v587, 0.0
        %v596 = vmax.f32 %v588, 0.0
        %v597 = vmax.f32 %v589, 0.0
        %v598 = vmax.f32 %v590, 0.0
        %v599 = vld [vmem:[%s8] sm:$0xf]
        %v600 = vld [vmem:[%s9] sm:$0xf]
        %602 = vset.pattern.permute.xlu0 0
        %603 = vperm.xlu0 %602, %v600
        %v604 = vpop.permute.xlu0 %603
        %vm606 = vcmask 261120
        %v608 = vsel %vm606, %v599, 0
        %610 = vmatprep.subr.mxu0 0.0
        %611 = vmatpush1.msra.mxu0 0.0
        %612 = vmatprep.subr.mxu0 0.0
        %613 = vmatpush1.msra.mxu0 0.0
        %614 = vmatprep.subr.mxu0 0.0
        %615 = vmatpush1.msra.mxu0 0.0
        %616 = vmatprep.subr.mxu0 0.0
        %617 = vmatpush1.msra.mxu0 0.0
        %618 = vmatprep.subr.mxu0 0.0
        %619 = vmatpush1.msra.mxu0 0.0
        %620 = vmatprep.subr.mxu0 0.0
        %621 = vmatpush1.msra.mxu0 0.0
        %622 = vmatprep.subr.mxu0 0.0
        %623 = vmatpush1.msra.mxu0 0.0
        %624 = vmatprep.subr.mxu0 0.0
        %625 = vmatpush1.msra.mxu0 0.0
        %626 = vmatprep.subr.mxu0 0.0
        %627 = vmatpush1.msra.mxu0 0.0
        %628 = vmatprep.subr.mxu0 0.0
        %629 = vmatpush1.msra.mxu0 0.0
        %630 = vmatprep.subr.mxu0 0.0
        %631 = vmatpush1.msra.mxu0 0.0
        %632 = vmatprep.subr.mxu0 0.0
        %633 = vmatpush1.msra.mxu0 0.0
        %634 = vmatprep.subr.mxu0 %v598
        %635 = vmatpush1.msra.mxu0 %v597
        %636 = vmatprep.subr.mxu0 %v596
        %637 = vmatpush1.msra.mxu0 %v595
        %638 = vmatprep.subr.mxu0 %v594
        %639 = vmatpush1.msra.mxu0 %v593
        %640 = vmatprep.subr.mxu0 %v592
        %641 = vmatpush1.msra.mxu0 %v591
        %642 = vmatprep.subr.mxu0 0.0
        %643 = vmatpush2.msra.mxu0 0.0
        %644 = vmatprep.subr.mxu0 0.0
        %645 = vmatpush2.msra.mxu0 0.0
        %646 = vmatprep.subr.mxu0 0.0
        %647 = vmatpush2.msra.mxu0 0.0
        %648 = vmatprep.subr.mxu0 0.0
        %649 = vmatpush2.msra.mxu0 0.0
        %650 = vmatprep.subr.mxu0 0.0
        %651 = vmatpush2.msra.mxu0 0.0
        %652 = vmatprep.subr.mxu0 0.0
        %653 = vmatpush2.msra.mxu0 0.0
        %654 = vmatprep.subr.mxu0 0.0
        %655 = vmatpush2.msra.mxu0 0.0
        %656 = vmatprep.subr.mxu0 0.0
        %657 = vmatpush2.msra.mxu0 0.0
        %658 = vmatprep.subr.mxu0 0.0
        %659 = vmatpush2.msra.mxu0 0.0
        %660 = vmatprep.subr.mxu0 0.0
        %661 = vmatpush2.msra.mxu0 0.0
        %662 = vmatprep.subr.mxu0 0.0
        %663 = vmatpush2.msra.mxu0 0.0
        %664 = vmatprep.subr.mxu0 0.0
        %665 = vmatpush2.msra.mxu0 0.0
        %666 = vmatprep.subr.mxu0 0.0
        %667 = vmatpush2.msra.mxu0 0.0
        %668 = vmatprep.subr.mxu0 0.0
        %669 = vmatpush2.msra.mxu0 0.0
        %670 = vmatprep.subr.mxu0 0.0
        %671 = vmatpush2.msra.mxu0 0.0
        %672 = vmatprep.subr.mxu0 0.0
        %673 = vmatpush2.msra.mxu0 0.0
        %674 = vmatprep.mubr.f32.mxu0 0.0
        %675 = vmatmul.mubr.f32.gmra.mxu0 %v608
        %v676 = vpop.f32.mrf.mxu0
        %v677 = vadd.f32 %v604, %v676
        %v678 = vpop.f32.mrf.mxu0
        %v679 = vadd.f32 %v604, %v678
        %680 = vdwg.mxu0
        %v682 = vcombine.high %v344, %v344
        %v684 = vsub.f32 %v677, %v344
        %v685 = vsub.f32 %v679, %v682
        %v686 = vmul.f32 %v684, %v684
        %v687 = vmul.f32 %v685, %v685
        %vm688 = vcmask 1043456
        %v689 = vsel %vm688, %v686, 0.0
        %v690 = vrot.slane %v689, 4
        %v691 = vadd.f32 %v689, %v690
        %v692 = vrot.slane %v691, 2
        %v693 = vadd.f32 %v691, %v692
        %v694 = vrot.slane %v693, 1
        %v695 = vadd.f32 %v693, %v694
        %v696 = vsel %vm688, %v687, 0.0
        %v697 = vrot.slane %v696, 4
        %v698 = vadd.f32 %v696, %v697
        %v699 = vrot.slane %v698, 2
        %v700 = vadd.f32 %v698, %v699
        %v701 = vrot.slane %v700, 1
        %v702 = vadd.f32 %v700, %v701
        %v703 = vadd.f32 %v695, %v702
        %704 = vadd.xlane.f32.xlu0 %v703
        %v705 = vpop.xlane.xlu0 %704
        %706 = vst [vmem:[%s322] sm:$0x1] %v705
        %s707 = sand.u32 %s210, 1
        %s708 = scalar_lea.sflag [#allocation7], %s707
        %s709 = sand.u32 %s210, 1
        %s710 = scalar_lea.vmem [#allocation6], %s709
        // Predicated region
        $region49: #{tpu_custom_call.1} parent=47 // pred_check
          %p711 = pneg %p220
        $region50: #{tpu_custom_call.1} parent=47 // pred_check_branch
          %713 = sbr.rel (%p711) target = $region52
        $region51: #{tpu_custom_call.1} parent=47 // pred_region
          %s715 = ssub.s32 16, 16
          %716 = vsyncadd %s708, %s715
          %s717 = smul.addr %s38, 16
          %s718 = scalar_lea.hbm %s10, %s717
          %s720 = sshll.u32 %s710, 4
          %s721 = int_to_ptr.vmem [resolvable:$true] %s720
          %723 = dma.vmem_to_hbm [thread:$0]  %s721, 16, %s718, %s708
        $region52: #{tpu_custom_call.1} parent=47 // pred_fallthru
          _
      $region48: #{tpu_custom_call.1} parent=5 // pred_fallthru
        _
      %p724 = scmp.le.s32.totalorder 2, %s33
      // Predicated region
      $region53: #{tpu_custom_call.1} parent=5 // pred_check
        %p725 = pneg %p724
      $region54: #{tpu_custom_call.1} parent=5 // pred_check_branch
        %727 = sbr.rel (%p725) target = $region56
      $region55: #{tpu_custom_call.1} parent=5 // pred_region
        %s728 = ssub.s32 %s33, 2
        // Predicated region
        $region57: #{tpu_custom_call.1} parent=55 // pred_check
          %p729 = pneg %p226
        $region58: #{tpu_custom_call.1} parent=55 // pred_check_branch
          %731 = sbr.rel (%p729) target = $region60
        $region59: #{tpu_custom_call.1} parent=55 // pred_region
          %s732 = sand.u32 %s211, 1
          %s733 = scalar_lea.sflag [#allocation7], %s732
          %s734 = sand.u32 %s211, 1
          %s735 = scalar_lea.vmem [#allocation6], %s734
          %736 = dma.done %s733, 16
        $region60: #{tpu_custom_call.1} parent=55 // pred_fallthru
          _
      $region56: #{tpu_custom_call.1} parent=5 // pred_fallthru
        _
    $region6: #{tpu_custom_call.1} parent=1 // loop_footer
      %s37 = sadd.s32 1, %s33
    $region7: #{tpu_custom_call.1} parent=1 // loop_footer_branch
      %32 = sbr.rel target = $region3
    $region8: #{tpu_custom_call.1} parent=1 // loop_exit
      _
    %737 = vsyncpa [#allocation7], 1
    %s738 = scalar_lea.sflag [#allocation7], 1
    %739 = vsyncpa %s738, 1

</llo_original>
